<compile_context>
chip_gen: v5e
topology: v5e:2x2
jax: 0.10.0
libtpu: 0.0.40
codegen_flags: <defaults>
</compile_context>

<pallas_src>
import functools

import jax
import jax.numpy as jnp
from jax import lax
from jax.experimental import pallas as pl
from jax.experimental.pallas import tpu as pltpu


def _alpha_kernel(x_ref, a_ref, w3m_ref, bs_ref, part_ref, *, B, B_blk, N):
    """Accumulate sum_b sigmoid(lhs_b @ rhs_b^T + bs) into part_ref[0]."""
    c = pl.program_id(0)            # reduction split (parallel across cores)
    i = pl.program_id(1)            # batch-block index within this split
    n_i = pl.num_programs(1)

    @pl.when(i == 0)
    def _init():
        part_ref[...] = jnp.zeros_like(part_ref)

    a = a_ref[...]                  # (F*T, T)  folded W1 x W2
    w3m = w3m_ref[...]              # (F*T, T)  folded W3 x I_T
    bs = bs_ref[...]                # (N, N)
    base = (c * n_i + i) * B_blk    # first global batch index in this block

    sig_sum = jnp.zeros((N, N), jnp.float32)
    for b in range(B_blk):          # small static unroll; 3 MXU matmuls per b
        xb = x_ref[b]                                                   # (N, F*T)
        lhs = jnp.dot(xb, a, preferred_element_type=jnp.float32)        # (N, T)
        rhs = jnp.dot(xb, w3m, preferred_element_type=jnp.float32)      # (N, T)
        prod = lax.dot_general(lhs, rhs, (((1,), (1,)), ((), ())),
                               preferred_element_type=jnp.float32)      # (N, N)
        # mask batches beyond B (x is zero-padded there, values are finite)
        valid = (base + b < B).astype(jnp.float32)
        sig_sum = sig_sum + valid * jax.nn.sigmoid(prod + bs)
    part_ref[0] = part_ref[0] + sig_sum


def _out_kernel(alpha_ref, x_ref, gamma_ref, o_ref):
    """o = gamma * alpha^T @ X + X on a lane-dense (N, c_blk) slab."""
    x = x_ref[...]                                                      # (N, c_blk)
    y = lax.dot_general(alpha_ref[...], x, (((0,), (0,)), ((), ())),
                        preferred_element_type=jnp.float32)             # (N, c_blk)
    o_ref[...] = gamma_ref[0] * y + x


def spatial_attention(x, W1, W2, W3, bs, Vs, gamma):
    B, F, N, T = x.shape
    FT = F * T
    f32 = jnp.float32
    x = x.astype(f32)

    # ---- fold the parameter chain into two (F*T, T) MXU operands ----------
    # lhs_b = (x_b . W1) . W2  == X_b(N,FT) @ A,   A[f*T+t, t'] = W1[t] * W2[f, t']
    # rhs_b =  W3 . x_b        == X_b(N,FT) @ M,   M[f*T+t, t'] = W3[f] * I[t, t']
    A = (W2.astype(f32)[:, None, :] * W1.astype(f32)[None, :, None]).reshape(FT, T)
    W3M = (W3.astype(f32)[:, None, None] *
           jnp.eye(T, dtype=f32)[None, :, :]).reshape(FT, T)
    bs2 = bs.reshape(N, N).astype(f32)

    # ---- kernel 1: batch-sum of sigmoid(product + bs) ----------------------
    # Block B_blk batches per grid step; keep the double-buffered x block
    # ~<= 2 MiB so the default scoped-VMEM limits (16 MiB on v5e) always hold.
    bytes_per_batch = N * FT * 4
    B_blk = int(max(1, min(B, 8, (1 << 20) // max(bytes_per_batch, 1))))
    G = -(-B // B_blk)                      # number of batch blocks
    n_split = 2 if G >= 2 else 1            # leading parallel axis: lets a
    g_per = -(-G // n_split)                # 2-TC chip (v7x) split the reduction
    B_pad = n_split * g_per * B_blk

    x_alpha = jnp.transpose(x, (0, 2, 1, 3)).reshape(B, N, FT)   # (B, N, F*T)
    if B_pad != B:
        x_alpha = jnp.pad(x_alpha, ((0, B_pad - B), (0, 0), (0, 0)))

    partials = pl.pallas_call(
        functools.partial(_alpha_kernel, B=B, B_blk=B_blk, N=N),
        out_shape=jax.ShapeDtypeStruct((n_split, N, N), f32),
        grid_spec=pltpu.PrefetchScalarGridSpec(
            num_scalar_prefetch=0,
            grid=(n_split, g_per),
            in_specs=[
                pl.BlockSpec((B_blk, N, FT), lambda c, i: (c * g_per + i, 0, 0)),
                pl.BlockSpec((FT, T), lambda c, i: (0, 0)),    # A
                pl.BlockSpec((FT, T), lambda c, i: (0, 0)),    # W3M
                pl.BlockSpec((N, N), lambda c, i: (0, 0)),     # bs
            ],
            out_specs=pl.BlockSpec((1, N, N), lambda c, i: (c, 0, 0)),
        ),
        compiler_params=pltpu.CompilerParams(
            dimension_semantics=("parallel", "arbitrary")),
    )(x_alpha, A, W3M, bs2)

    # Vs @ mean_b(.) is linear, so it is one tiny matmul on the summed partials.
    alpha = jnp.dot(Vs.astype(f32), jnp.sum(partials, axis=0),
                    preferred_element_type=f32) * (1.0 / B)

    # ---- kernel 2: out = gamma * alpha^T @ x + x (lane-dense slab) ---------
    C = B * FT
    LANE_BLOCK = 2048                       # multiple of 128 lanes
    if C <= LANE_BLOCK:
        c_blk, C_pad = C, C
    else:
        c_blk = LANE_BLOCK
        C_pad = -(-C // c_blk) * c_blk

    x_out = jnp.transpose(x, (2, 0, 1, 3)).reshape(N, C)         # (N, B*F*T)
    if C_pad != C:
        x_out = jnp.pad(x_out, ((0, 0), (0, C_pad - C)))

    yq = pl.pallas_call(
        _out_kernel,
        out_shape=jax.ShapeDtypeStruct((N, C_pad), f32),
        grid_spec=pltpu.PrefetchScalarGridSpec(
            num_scalar_prefetch=0,
            grid=(C_pad // c_blk,),
            in_specs=[
                pl.BlockSpec((N, N), lambda j: (0, 0)),                # alpha
                pl.BlockSpec((N, c_blk), lambda j: (0, j)),            # x slab
                pl.BlockSpec(memory_space=pltpu.MemorySpace.SMEM),     # gamma (1,)
            ],
            out_specs=pl.BlockSpec((N, c_blk), lambda j: (0, j)),
        ),
        compiler_params=pltpu.CompilerParams(dimension_semantics=("parallel",)),
    )(alpha, x_out, gamma.astype(f32).reshape(1))

    out = yq[:, :C].reshape(N, B, F, T).transpose(1, 2, 0, 3)    # (B, F, N, T)
    return out, alpha


def reference(x, W1, W2, W3, bs, Vs, gamma):
    """Pure-JAX transcription of the torch forward (for verification)."""
    xp = jnp.transpose(x, (0, 2, 1, 3))                     # (B, N, F, T)
    lhs = jnp.matmul(jnp.matmul(xp, W1), W2)                # (B, N, T)
    rhs = jnp.swapaxes(jnp.matmul(W3, xp), -1, -2)          # (B, T, N)
    product = jnp.matmul(lhs, rhs)                          # (B, N, N)
    S = jnp.matmul(Vs, jax.nn.sigmoid(product + bs))        # (B, N, N)
    alpha = jnp.mean(S, axis=0)                             # (N, N)
    xpt = jnp.transpose(xp, (0, 3, 2, 1))                   # (B, T, F, N)
    out = gamma * jnp.matmul(xpt, alpha) + xpt
    out = jnp.transpose(out, (0, 2, 3, 1))                  # (B, F, N, T)
    return out, alpha


if __name__ == "__main__":
    B, F, N, T = 2, 4, 16, 8
    key = jax.random.PRNGKey(0)
    kx, k1, k2, k3, k4, k5 = jax.random.split(key, 6)

    x = jax.random.normal(kx, (B, F, N, T), dtype=jnp.float32)
    # Deterministic parameter init matching the module's shapes:
    W1 = jax.random.uniform(k1, (T,), dtype=jnp.float32)                                  # uniform_
    W2 = jax.random.uniform(k2, (F, T), jnp.float32, -1.0, 1.0) * (6.0 / (F + T)) ** 0.5  # xavier_uniform_
    W3 = jax.random.uniform(k3, (F,), dtype=jnp.float32)      # module leaves W3 uninit; deterministic here
    bs = jax.random.uniform(k4, (1, N, N), jnp.float32, -1.0, 1.0) * (6.0 / (2 * N)) ** 0.5
    Vs = jax.random.uniform(k5, (N, N), jnp.float32, -1.0, 1.0) * (6.0 / (2 * N)) ** 0.5
    gamma = jnp.full((1,), 0.7, jnp.float32)   # nonzero so the attention path of `out` is exercised

    out, alpha = jax.block_until_ready(
        jax.jit(spatial_attention)(x, W1, W2, W3, bs, Vs, gamma))

    out_expected, alpha_expected = reference(x, W1, W2, W3, bs, Vs, gamma)
    assert out.shape == (B, F, N, T) and alpha.shape == (N, N)
    assert jnp.allclose(alpha, alpha_expected, atol=5e-2, rtol=5e-2)
    assert jnp.allclose(out, out_expected, atol=5e-2, rtol=5e-2)

    print("KERNEL_OK")
</pallas_src>

<mosaic_0001>
module attributes {stable_mosaic.version = 11 : i64} {
  func.func @_alpha_kernel(%arg0: i32, %arg1: i32, %arg2: memref<2x16x32xf32, #tpu.memory_space<vmem>>, %arg3: memref<32x8xf32, #tpu.memory_space<vmem>>, %arg4: memref<32x8xf32, #tpu.memory_space<vmem>>, %arg5: memref<16x16xf32, #tpu.memory_space<vmem>>, %arg6: memref<1x16x16xf32, #tpu.memory_space<vmem>>) attributes {dimension_semantics = [#tpu.dimension_semantics<parallel>, #tpu.dimension_semantics<arbitrary>], iteration_bounds = array<i64: 1, 1>, scalar_prefetch = 0 : i64, scratch_operands = 0 : i64, tpu.core_type = #tpu.core_type<tc>, window_params = [{transform_indices = @transform_0, window_bounds = array<i64: 2, 16, 32>}, {pipeline_mode = #tpu.pipeline_mode<synchronous>, transform_indices = @transform_1, window_bounds = array<i64: 32, 8>}, {pipeline_mode = #tpu.pipeline_mode<synchronous>, transform_indices = @transform_2, window_bounds = array<i64: 32, 8>}, {pipeline_mode = #tpu.pipeline_mode<synchronous>, transform_indices = @transform_3, window_bounds = array<i64: 16, 16>}, {transform_indices = @transform_4, window_bounds = array<i64: 1, 16, 16>}]} {
    %c0_i32 = arith.constant 0 : i32
    %0 = arith.cmpi eq, %arg1, %c0_i32 : i32
    %1 = arith.extui %0 : i1 to i32
    %c0_i32_0 = arith.constant 0 : i32
    %2 = arith.cmpi ne, %1, %c0_i32_0 : i32
    scf.if %2 {
      %cst_29 = arith.constant 0.000000e+00 : f32
      %52 = vector.broadcast %cst_29 : f32 to vector<1x16x16xf32>
      %c0_30 = arith.constant 0 : index
      %c0_31 = arith.constant 0 : index
      %c0_32 = arith.constant 0 : index
      %53 = vector.load %arg6[%c0_30, %c0_31, %c0_32] : memref<1x16x16xf32, #tpu.memory_space<vmem>>, vector<1x16x16xf32>
      tpu.vector_store %arg6[%c0_30, %c0_31, %c0_32], %52 {strides = array<i32>} : memref<1x16x16xf32, #tpu.memory_space<vmem>>, vector<1x16x16xf32>,
    } else {
    }
    %c0 = arith.constant 0 : index
    %c0_1 = arith.constant 0 : index
    %3 = vector.load %arg3[%c0, %c0_1] : memref<32x8xf32, #tpu.memory_space<vmem>>, vector<32x8xf32>
    %c0_2 = arith.constant 0 : index
    %c0_3 = arith.constant 0 : index
    %4 = vector.load %arg4[%c0_2, %c0_3] : memref<32x8xf32, #tpu.memory_space<vmem>>, vector<32x8xf32>
    %c0_4 = arith.constant 0 : index
    %c0_5 = arith.constant 0 : index
    %5 = vector.load %arg5[%c0_4, %c0_5] : memref<16x16xf32, #tpu.memory_space<vmem>>, vector<16x16xf32>
    %c1_i32 = arith.constant 1 : i32
    %6 = arith.muli %arg0, %c1_i32 : i32
    %7 = arith.addi %6, %arg1 : i32
    %c2_i32 = arith.constant 2 : i32
    %8 = arith.muli %7, %c2_i32 : i32
    %cst = arith.constant 0.000000e+00 : f32
    %9 = vector.broadcast %cst : f32 to vector<16x16xf32>
    %c0_6 = arith.constant 0 : index
    %c0_7 = arith.constant 0 : index
    %c0_8 = arith.constant 0 : index
    %10 = vector.load %arg2[%c0_6, %c0_7, %c0_8] : memref<2x16x32xf32, #tpu.memory_space<vmem>>, vector<1x16x32xf32>
    %11 = vector.shape_cast %10 : vector<1x16x32xf32> to vector<16x32xf32>
    %cst_9 = arith.constant dense<0.000000e+00> : vector<16x8xf32>
    %12 = tpu.matmul %11, %3, %cst_9 {dimension_numbers = #tpu.dot_dimension_numbers<[1], [0], [0], [1], [0, 0, 1, 1], [], []>} : vector<16x32xf32>, vector<32x8xf32>, vector<16x8xf32> -> vector<16x8xf32>
    %cst_10 = arith.constant dense<0.000000e+00> : vector<16x8xf32>
    %13 = tpu.matmul %11, %4, %cst_10 {dimension_numbers = #tpu.dot_dimension_numbers<[1], [0], [0], [1], [0, 0, 1, 1], [], []>} : vector<16x32xf32>, vector<32x8xf32>, vector<16x8xf32> -> vector<16x8xf32>
    %cst_11 = arith.constant dense<0.000000e+00> : vector<16x16xf32>
    %14 = tpu.matmul %12, %13, %cst_11 {dimension_numbers = #tpu.dot_dimension_numbers<[1], [1], [0], [0], [0, 0, 1, 0], [], []>} : vector<16x8xf32>, vector<16x8xf32>, vector<16x16xf32> -> vector<16x16xf32>
    %c0_i32_12 = arith.constant 0 : i32
    %15 = arith.addi %8, %c0_i32_12 : i32
    %c2_i32_13 = arith.constant 2 : i32
    %16 = arith.cmpi slt, %15, %c2_i32_13 : i32
    %17 = arith.extui %16 : i1 to i32
    %18 = arith.sitofp %17 : i32 to f32
    %19 = arith.addf %14, %5 : vector<16x16xf32>
    %20 = arith.negf %19 : vector<16x16xf32>
    %21 = math.exp %20 : vector<16x16xf32>
    %cst_14 = arith.constant 1.000000e+00 : f32
    %22 = vector.broadcast %cst_14 : f32 to vector<16x16xf32>
    %23 = arith.addf %22, %21 : vector<16x16xf32>
    %24 = arith.divf %22, %23 : vector<16x16xf32>
    %25 = vector.broadcast %18 : f32 to vector<16x16xf32>
    %26 = arith.mulf %25, %24 : vector<16x16xf32>
    %27 = arith.addf %9, %26 : vector<16x16xf32>
    %c1 = arith.constant 1 : index
    %c0_15 = arith.constant 0 : index
    %c0_16 = arith.constant 0 : index
    %28 = vector.load %arg2[%c1, %c0_15, %c0_16] : memref<2x16x32xf32, #tpu.memory_space<vmem>>, vector<1x16x32xf32>
    %29 = vector.shape_cast %28 : vector<1x16x32xf32> to vector<16x32xf32>
    %cst_17 = arith.constant dense<0.000000e+00> : vector<16x8xf32>
    %30 = tpu.matmul %29, %3, %cst_17 {dimension_numbers = #tpu.dot_dimension_numbers<[1], [0], [0], [1], [0, 0, 1, 1], [], []>} : vector<16x32xf32>, vector<32x8xf32>, vector<16x8xf32> -> vector<16x8xf32>
    %cst_18 = arith.constant dense<0.000000e+00> : vector<16x8xf32>
    %31 = tpu.matmul %29, %4, %cst_18 {dimension_numbers = #tpu.dot_dimension_numbers<[1], [0], [0], [1], [0, 0, 1, 1], [], []>} : vector<16x32xf32>, vector<32x8xf32>, vector<16x8xf32> -> vector<16x8xf32>
    %cst_19 = arith.constant dense<0.000000e+00> : vector<16x16xf32>
    %32 = tpu.matmul %30, %31, %cst_19 {dimension_numbers = #tpu.dot_dimension_numbers<[1], [1], [0], [0], [0, 0, 1, 0], [], []>} : vector<16x8xf32>, vector<16x8xf32>, vector<16x16xf32> -> vector<16x16xf32>
    %c1_i32_20 = arith.constant 1 : i32
    %33 = arith.addi %8, %c1_i32_20 : i32
    %c2_i32_21 = arith.constant 2 : i32
    %34 = arith.cmpi slt, %33, %c2_i32_21 : i32
    %35 = arith.extui %34 : i1 to i32
    %36 = arith.sitofp %35 : i32 to f32
    %37 = arith.addf %32, %5 : vector<16x16xf32>
    %38 = arith.negf %37 : vector<16x16xf32>
    %39 = math.exp %38 : vector<16x16xf32>
    %cst_22 = arith.constant 1.000000e+00 : f32
    %40 = vector.broadcast %cst_22 : f32 to vector<16x16xf32>
    %41 = arith.addf %40, %39 : vector<16x16xf32>
    %42 = arith.divf %40, %41 : vector<16x16xf32>
    %43 = vector.broadcast %36 : f32 to vector<16x16xf32>
    %44 = arith.mulf %43, %42 : vector<16x16xf32>
    %45 = arith.addf %27, %44 : vector<16x16xf32>
    %c0_23 = arith.constant 0 : index
    %c0_24 = arith.constant 0 : index
    %c0_25 = arith.constant 0 : index
    %46 = vector.load %arg6[%c0_23, %c0_24, %c0_25] : memref<1x16x16xf32, #tpu.memory_space<vmem>>, vector<1x16x16xf32>
    %47 = vector.shape_cast %46 : vector<1x16x16xf32> to vector<16x16xf32>
    %48 = arith.addf %47, %45 : vector<16x16xf32>
    %c0_26 = arith.constant 0 : index
    %c0_27 = arith.constant 0 : index
    %c0_28 = arith.constant 0 : index
    %49 = vector.load %arg6[%c0_26, %c0_27, %c0_28] : memref<1x16x16xf32, #tpu.memory_space<vmem>>, vector<1x16x16xf32>
    %50 = vector.shape_cast %49 : vector<1x16x16xf32> to vector<16x16xf32>
    %51 = vector.shape_cast %48 : vector<16x16xf32> to vector<1x16x16xf32>
    tpu.vector_store %arg6[%c0_26, %c0_27, %c0_28], %51 {strides = array<i32>} : memref<1x16x16xf32, #tpu.memory_space<vmem>>, vector<1x16x16xf32>,
    return
  }
  func.func @transform_0(%arg0: i32, %arg1: i32) -> (i32, i32, i32) {
    %c1_i32 = arith.constant 1 : i32
    %0 = arith.muli %arg0, %c1_i32 : i32
    %1 = arith.addi %0, %arg1 : i32
    %c0_i32 = arith.constant 0 : i32
    %c0_i32_0 = arith.constant 0 : i32
    %c0_i32_1 = arith.constant 0 : i32
    return %1, %c0_i32, %c0_i32_0 : i32, i32, i32
  }
  func.func @transform_1(%arg0: i32, %arg1: i32) -> (i32, i32) {
    %c0_i32 = arith.constant 0 : i32
    %c0_i32_0 = arith.constant 0 : i32
    %c0_i32_1 = arith.constant 0 : i32
    return %c0_i32, %c0_i32_0 : i32, i32
  }
  func.func @transform_2(%arg0: i32, %arg1: i32) -> (i32, i32) {
    %c0_i32 = arith.constant 0 : i32
    %c0_i32_0 = arith.constant 0 : i32
    %c0_i32_1 = arith.constant 0 : i32
    return %c0_i32, %c0_i32_0 : i32, i32
  }
  func.func @transform_3(%arg0: i32, %arg1: i32) -> (i32, i32) {
    %c0_i32 = arith.constant 0 : i32
    %c0_i32_0 = arith.constant 0 : i32
    %c0_i32_1 = arith.constant 0 : i32
    return %c0_i32, %c0_i32_0 : i32, i32
  }
  func.func @transform_4(%arg0: i32, %arg1: i32) -> (i32, i32, i32) {
    %c0_i32 = arith.constant 0 : i32
    %c0_i32_0 = arith.constant 0 : i32
    %c0_i32_1 = arith.constant 0 : i32
    return %arg0, %c0_i32, %c0_i32_0 : i32, i32, i32
  }
}

module attributes {stable_mosaic.version = 11 : i64} {
  func.func @_out_kernel(%arg0: i32, %arg1: memref<16x16xf32, #tpu.memory_space<vmem>>, %arg2: memref<16x64xf32, #tpu.memory_space<vmem>>, %arg3: memref<1xf32, #tpu.memory_space<smem>>, %arg4: memref<16x64xf32, #tpu.memory_space<vmem>>) attributes {dimension_semantics = [#tpu.dimension_semantics<parallel>], iteration_bounds = array<i64: 1>, scalar_prefetch = 0 : i64, scratch_operands = 0 : i64, tpu.core_type = #tpu.core_type<tc>, window_params = [{pipeline_mode = #tpu.pipeline_mode<synchronous>, transform_indices = @transform_0, window_bounds = array<i64: 16, 16>}, {transform_indices = @transform_1, window_bounds = array<i64: 16, 64>}, {transform_indices = @transform_2, window_bounds = array<i64: 1>}, {transform_indices = @transform_3, window_bounds = array<i64: 16, 64>}]} {
    %c0 = arith.constant 0 : index
    %c0_0 = arith.constant 0 : index
    %0 = vector.load %arg2[%c0, %c0_0] : memref<16x64xf32, #tpu.memory_space<vmem>>, vector<16x64xf32>
    %c0_1 = arith.constant 0 : index
    %c0_2 = arith.constant 0 : index
    %1 = vector.load %arg1[%c0_1, %c0_2] : memref<16x16xf32, #tpu.memory_space<vmem>>, vector<16x16xf32>
    %cst = arith.constant dense<0.000000e+00> : vector<16x64xf32>
    %2 = tpu.matmul %1, %0, %cst {dimension_numbers = #tpu.dot_dimension_numbers<[0], [0], [1], [1], [0, 1, 1, 1], [], []>} : vector<16x16xf32>, vector<16x64xf32>, vector<16x64xf32> -> vector<16x64xf32>
    %c0_3 = arith.constant 0 : index
    %3 = memref.load %arg3[%c0_3] : memref<1xf32, #tpu.memory_space<smem>>
    %4 = vector.broadcast %3 : f32 to vector<16x64xf32>
    %5 = arith.mulf %4, %2 : vector<16x64xf32>
    %6 = arith.addf %5, %0 : vector<16x64xf32>
    %c0_4 = arith.constant 0 : index
    %c0_5 = arith.constant 0 : index
    %7 = vector.load %arg4[%c0_4, %c0_5] : memref<16x64xf32, #tpu.memory_space<vmem>>, vector<16x64xf32>
    tpu.vector_store %arg4[%c0_4, %c0_5], %6 {strides = array<i32>} : memref<16x64xf32, #tpu.memory_space<vmem>>, vector<16x64xf32>,
    return
  }
  func.func @transform_0(%arg0: i32) -> (i32, i32) {
    %c0_i32 = arith.constant 0 : i32
    %c0_i32_0 = arith.constant 0 : i32
    %c0_i32_1 = arith.constant 0 : i32
    return %c0_i32, %c0_i32_0 : i32, i32
  }
  func.func @transform_1(%arg0: i32) -> (i32, i32) {
    %c0_i32 = arith.constant 0 : i32
    %c0_i32_0 = arith.constant 0 : i32
    return %c0_i32, %arg0 : i32, i32
  }
  func.func @transform_2(%arg0: i32) -> i32 {
    %c0_i32 = arith.constant 0 : i32
    %c0_i32_0 = arith.constant 0 : i32
    return %c0_i32 : i32
  }
  func.func @transform_3(%arg0: i32) -> (i32, i32) {
    %c0_i32 = arith.constant 0 : i32
    %c0_i32_0 = arith.constant 0 : i32
    return %c0_i32, %arg0 : i32, i32
  }
}

</mosaic_0001>

<llo_original>
// kernel: spatial_attention.3
$region0: #{spatial_attention.3}
  #allocation0 [shape = 'u32[]', space=smem, size = 0x4, offset = 0x4, fixed_abs, tag = 'smem constant byte address 0x4 - core index']
  #allocation1 [shape = 'u32[72,128]{1,0:T(1,128)}', space=vmem, size = 0x9000, scoped, tag = 'internal scratch']
  #allocation2 [shape = 'f32[1]{0:T(128)S(6)}', space=smem, size = 0x200, scoped, tag = 'scoped memory for spatial_attention.3']
  %s0 = inlined_call_operand.vmem [shape: f32[16,16], index: 0, kind: input, shape index: {}]
  %s1 = inlined_call_operand.vmem [shape: f32[16,64], index: 1, kind: input, shape index: {}]
  %s2 = inlined_call_operand.<no memory space> [shape: f32[1], index: 2, kind: input, shape index: {}]
  %s3 = inlined_call_operand.vmem [shape: f32[16,64], index: 3, kind: output, shape index: {}]
  %s4 = sld [smem:[#allocation0]]
  $region22: #{spatial_attention.3} parent=0
    _
  %s6 = ssub.s32 1, %s4
  %s7 = scalar_select 0, %s6, %s4
  %8 = sst [smem:[#allocation2]] %s2
  // Predicated region
  $region2: #{spatial_attention.3} parent=0 // pred_check
    _
  $region3: #{spatial_attention.3} parent=0 // pred_check_branch
    %10 = sbr.rel (0) target = $region5
  $region4: #{spatial_attention.3} parent=0 // pred_region
    _
  $region5: #{spatial_attention.3} parent=0 // pred_fallthru
    _
  // Predicated region
  $region6: #{spatial_attention.3} parent=0 // pred_check
    _
  $region7: #{spatial_attention.3} parent=0 // pred_check_branch
    %12 = sbr.rel (0) target = $region9
  $region8: #{spatial_attention.3} parent=0 // pred_region
    _
  $region9: #{spatial_attention.3} parent=0 // pred_fallthru
    _
  // Predicated region
  $region10: #{spatial_attention.3} parent=0 // pred_check
    _
  $region11: #{spatial_attention.3} parent=0 // pred_check_branch
    %14 = sbr.rel (0) target = $region13
  $region12: #{spatial_attention.3} parent=0 // pred_region
    _
  $region13: #{spatial_attention.3} parent=0 // pred_fallthru
    _
  %v15 = vld [vmem:[%s1] sm:$0xff]
  %v16 = vld [vmem:[%s1 + $0x8] sm:$0xff]
  %v17 = vld [vmem:[%s0] sm:$0xff]
  %v18 = vld [vmem:[%s0 + $0x8] sm:$0xff]
  %19 = vxpose.xlu0.b32.start [1/16] %v17, 128
  %20 = vxpose.xlu0.b32.cont [2/16] %v18, 128
  %21 = vxpose.xlu0.b32.cont [3/16] 0.0, 128
  %22 = vxpose.xlu0.b32.cont [4/16] 0.0, 128
  %23 = vxpose.xlu0.b32.cont [5/16] 0.0, 128
  %24 = vxpose.xlu0.b32.cont [6/16] 0.0, 128
  %25 = vxpose.xlu0.b32.cont [7/16] 0.0, 128
  %26 = vxpose.xlu0.b32.cont [8/16] 0.0, 128
  %27 = vxpose.xlu0.b32.cont [9/16] 0.0, 128
  %28 = vxpose.xlu0.b32.cont [10/16] 0.0, 128
  %29 = vxpose.xlu0.b32.cont [11/16] 0.0, 128
  %30 = vxpose.xlu0.b32.cont [12/16] 0.0, 128
  %31 = vxpose.xlu0.b32.cont [13/16] 0.0, 128
  %32 = vxpose.xlu0.b32.cont [14/16] 0.0, 128
  %33 = vxpose.xlu0.b32.cont [15/16] 0.0, 128
  %34 = vxpose.xlu0.b32.end [16/16] 0.0, 128
  %v35 = vpop.trf.xlu0
  %v36 = vpop.trf.xlu0
  %v37 = vpop.trf.xlu0
  %v38 = vpop.trf.xlu0
  %v39 = vpop.trf.xlu0
  %v40 = vpop.trf.xlu0
  %v41 = vpop.trf.xlu0
  %v42 = vpop.trf.xlu0
  %v43 = vpop.trf.xlu0
  %v44 = vpop.trf.xlu0
  %v45 = vpop.trf.xlu0
  %v46 = vpop.trf.xlu0
  %v47 = vpop.trf.xlu0
  %v48 = vpop.trf.xlu0
  %v49 = vpop.trf.xlu0
  %v50 = vpop.trf.xlu0
  %vm51 = vcmask 130048
  %v53 = vsel %vm51, %v35, 0
  %v56 = vsel %vm51, %v36, 0
  %58 = vmatpush.msra.mxu0 0.0
  %59 = vmatpush.msra.mxu0 0.0
  %60 = vmatpush.msra.mxu0 0.0
  %61 = vmatpush.msra.mxu0 0.0
  %62 = vmatpush.msra.mxu0 0.0
  %63 = vmatpush.msra.mxu0 0.0
  %64 = vmatpush.msra.mxu0 0.0
  %65 = vmatpush.msra.mxu0 0.0
  %66 = vmatpush.msra.mxu0 0.0
  %67 = vmatpush.msra.mxu0 0.0
  %68 = vmatpush.msra.mxu0 0.0
  %69 = vmatpush.msra.mxu0 0.0
  %70 = vmatpush.msra.mxu0 0.0
  %71 = vmatpush.msra.mxu0 0.0
  %72 = vmatpush.msra.mxu0 %v16
  %73 = vmatpush.msra.mxu0 %v15
  %74 = vmatmul.f32.gmra.mxu0 %v53
  %v75 = vpop.f32.mrf.mxu0
  %v76 = vadd.f32 0.0, %v75
  %77 = vmatmul.f32.gmra.mxu0 %v56
  %v78 = vpop.f32.mrf.mxu0
  %v79 = vadd.f32 0.0, %v78
  %80 = vdwg.mxu0
  %s81 = sld [smem:[#allocation2]]
  %v82 = vstv %s81
  %v83 = vmul.f32 %v82, %v76
  %v84 = vmul.f32 %v82, %v79
  %v85 = vadd.f32 %v83, %v15
  %v86 = vadd.f32 %v84, %v16
  %vm87 = vcmask 523264
  %88 = vst.msk [vmem:[%s3] sm:$0xff] %vm87, %v85
  %89 = vst.msk [vmem:[%s3 + $0x8] sm:$0xff] %vm87, %v86
  // Predicated region
  $region14: #{spatial_attention.3} parent=0 // pred_check
    _
  $region15: #{spatial_attention.3} parent=0 // pred_check_branch
    %91 = sbr.rel (0) target = $region17
  $region16: #{spatial_attention.3} parent=0 // pred_region
    _
  $region17: #{spatial_attention.3} parent=0 // pred_fallthru
    _
  // Predicated region
  $region18: #{spatial_attention.3} parent=0 // pred_check
    _
  $region19: #{spatial_attention.3} parent=0 // pred_check_branch
    %93 = sbr.rel (0) target = $region21
  $region20: #{spatial_attention.3} parent=0 // pred_region
    _
  $region21: #{spatial_attention.3} parent=0 // pred_fallthru
    _

// kernel: spatial_attention.2
$region0: #{spatial_attention.2}
  #allocation0 [shape = 'u32[]', space=smem, size = 0x4, offset = 0x4, fixed_abs, tag = 'smem constant byte address 0x4 - core index']
  #allocation1 [shape = 'u32[72,128]{1,0:T(1,128)}', space=vmem, size = 0x9000, scoped, tag = 'internal scratch']
  %s0 = inlined_call_operand.vmem [shape: f32[2,16,32], index: 0, kind: input, shape index: {}]
  %s1 = inlined_call_operand.vmem [shape: f32[32,8], index: 1, kind: input, shape index: {}]
  %s2 = inlined_call_operand.vmem [shape: f32[32,8], index: 2, kind: input, shape index: {}]
  %s3 = inlined_call_operand.vmem [shape: f32[16,16], index: 3, kind: input, shape index: {}]
  %s4 = inlined_call_operand.vmem [shape: f32[1,16,16], index: 4, kind: output, shape index: {}]
  %s5 = sld [smem:[#allocation0]]
  $region30: #{spatial_attention.2} parent=0
    _
  %s7 = ssub.s32 1, %s5
  %s8 = scalar_select 0, %s7, %s5
  // Predicated region
  $region2: #{spatial_attention.2} parent=0 // pred_check
    _
  $region3: #{spatial_attention.2} parent=0 // pred_check_branch
    %10 = sbr.rel (0) target = $region5
  $region4: #{spatial_attention.2} parent=0 // pred_region
    %s11 = sadd.s32 0, 0
    %s12 = smul.u32 2, %s11
    %p13 = scmp.lt.s32.totalorder %s12, 1
    %s14 = scalar_select %p13, %s12, 1
    %s15 = smul.addr %s14, 2
    %s16 = smul.addr %s15, 8
    %s17 = scalar_lea.vmem %s0, %s16
    %s18 = sadd.s32 0, 0
    %s19 = smul.u32 2, %s18
  $region5: #{spatial_attention.2} parent=0 // pred_fallthru
    _
  // Predicated region
  $region6: #{spatial_attention.2} parent=0 // pred_check
    _
  $region7: #{spatial_attention.2} parent=0 // pred_check_branch
    %21 = sbr.rel (0) target = $region9
  $region8: #{spatial_attention.2} parent=0 // pred_region
    _
  $region9: #{spatial_attention.2} parent=0 // pred_fallthru
    _
  // Predicated region
  $region10: #{spatial_attention.2} parent=0 // pred_check
    _
  $region11: #{spatial_attention.2} parent=0 // pred_check_branch
    %23 = sbr.rel (0) target = $region13
  $region12: #{spatial_attention.2} parent=0 // pred_region
    _
  $region13: #{spatial_attention.2} parent=0 // pred_fallthru
    _
  // Predicated region
  $region14: #{spatial_attention.2} parent=0 // pred_check
    _
  $region15: #{spatial_attention.2} parent=0 // pred_check_branch
    %25 = sbr.rel (0) target = $region17
  $region16: #{spatial_attention.2} parent=0 // pred_region
    _
  $region17: #{spatial_attention.2} parent=0 // pred_fallthru
    _
  %s26 = sadd.s32 0, 0
  %s27 = smul.u32 2, %s26
  %p28 = scmp.lt.s32.totalorder %s27, 1
  %s29 = scalar_select %p28, %s27, 1
  %s30 = smul.addr %s29, 2
  %s31 = smul.addr %s30, 8
  %s32 = scalar_lea.vmem %s0, %s31
  %s33 = sadd.s32 0, 0
  %s34 = smul.u32 2, %s33
  %p35 = scmp.lt.s32.totalorder %s34, 1
  %s36 = scalar_select %p35, %s34, 1
  %s37 = smul.addr %s36, 2
  %s38 = smul.addr %s37, 8
  %s39 = scalar_lea.vmem %s0, %s38
  %s40 = sadd.s32 0, 0
  %s41 = smul.u32 2, %s40
  %p42 = scmp.eq.s32.totalorder 0, 0
  // Predicated region
  $region18: #{spatial_attention.2} parent=0 // pred_check
    %p43 = pneg %p42
  $region19: #{spatial_attention.2} parent=0 // pred_check_branch
    %45 = sbr.rel (%p43) target = $region21
  $region20: #{spatial_attention.2} parent=0 // pred_region
    %vm46 = vcmask 130048
    %47 = vst.msk [vmem:[%s4] sm:$0xff] %vm46, 0.0
    %48 = vst.msk [vmem:[%s4 + $0x8] sm:$0xff] %vm46, 0.0
  $region21: #{spatial_attention.2} parent=0 // pred_fallthru
    _
  %v49 = vld [vmem:[%s1] sm:$0xff]
  %v50 = vld [vmem:[%s1 + $0x8] sm:$0xff]
  %v51 = vld [vmem:[%s1 + $0x10] sm:$0xff]
  %v52 = vld [vmem:[%s1 + $0x18] sm:$0xff]
  %v53 = vld [vmem:[%s2] sm:$0xff]
  %v54 = vld [vmem:[%s2 + $0x8] sm:$0xff]
  %v55 = vld [vmem:[%s2 + $0x10] sm:$0xff]
  %v56 = vld [vmem:[%s2 + $0x18] sm:$0xff]
  %v57 = vld [vmem:[%s3] sm:$0xff]
  %v58 = vld [vmem:[%s3 + $0x8] sm:$0xff]
  %s59 = sadd.s32 0, 0
  %s60 = smul.u32 %s59, 2
  %v61 = vld [vmem:[%s39] sm:$0xff]
  %v62 = vld [vmem:[%s39 + $0x8] sm:$0xff]
  %vm63 = vcmask 261120
  %v65 = vsel %vm63, %v61, 0
  %v68 = vsel %vm63, %v62, 0
  %70 = vmatpush.msra.mxu0 0.0
  %71 = vmatpush.msra.mxu0 0.0
  %72 = vmatpush.msra.mxu0 0.0
  %73 = vmatpush.msra.mxu0 0.0
  %74 = vmatpush.msra.mxu0 0.0
  %75 = vmatpush.msra.mxu0 0.0
  %76 = vmatpush.msra.mxu0 0.0
  %77 = vmatpush.msra.mxu0 0.0
  %78 = vmatpush.msra.mxu0 0.0
  %79 = vmatpush.msra.mxu0 0.0
  %80 = vmatpush.msra.mxu0 0.0
  %81 = vmatpush.msra.mxu0 0.0
  %82 = vmatpush.msra.mxu0 %v52
  %83 = vmatpush.msra.mxu0 %v51
  %84 = vmatpush.msra.mxu0 %v50
  %85 = vmatpush.msra.mxu0 %v49
  %86 = vmatmul.f32.gmra.mxu0 %v65
  %v87 = vpop.f32.mrf.mxu0
  %v88 = vadd.f32 0.0, %v87
  %89 = vmatmul.f32.gmra.mxu0 %v68
  %v90 = vpop.f32.mrf.mxu0
  %v91 = vadd.f32 0.0, %v90
  %92 = vdwg.mxu0
  %93 = vmatpush.msra.mxu0 0.0
  %94 = vmatpush.msra.mxu0 0.0
  %95 = vmatpush.msra.mxu0 0.0
  %96 = vmatpush.msra.mxu0 0.0
  %97 = vmatpush.msra.mxu0 0.0
  %98 = vmatpush.msra.mxu0 0.0
  %99 = vmatpush.msra.mxu0 0.0
  %100 = vmatpush.msra.mxu0 0.0
  %101 = vmatpush.msra.mxu0 0.0
  %102 = vmatpush.msra.mxu0 0.0
  %103 = vmatpush.msra.mxu0 0.0
  %104 = vmatpush.msra.mxu0 0.0
  %105 = vmatpush.msra.mxu0 %v56
  %106 = vmatpush.msra.mxu0 %v55
  %107 = vmatpush.msra.mxu0 %v54
  %108 = vmatpush.msra.mxu0 %v53
  %109 = vmatmul.f32.gmra.mxu0 %v65
  %v110 = vpop.f32.mrf.mxu0
  %v111 = vadd.f32 0.0, %v110
  %112 = vmatmul.f32.gmra.mxu0 %v68
  %v113 = vpop.f32.mrf.mxu0
  %v114 = vadd.f32 0.0, %v113
  %115 = vdwg.mxu0
  %p116 = scmp.lt.s32.totalorder %s60, 2
  %s117 = scalar_select %p116, 1, 0
  %s118 = scvt.s32.f32 %s117
  %vm119 = vcmask 64512
  %v121 = vsel %vm119, %v88, 0
  %v124 = vsel %vm119, %v91, 0
  %v127 = vsel %vm119, %v111, 0
  %v130 = vsel %vm119, %v114, 0
  %132 = vmatpush.xpose.msra.mxu0 0.0
  %133 = vmatpush.xpose.msra.mxu0 0.0
  %134 = vmatpush.xpose.msra.mxu0 0.0
  %135 = vmatpush.xpose.msra.mxu0 0.0
  %136 = vmatpush.xpose.msra.mxu0 0.0
  %137 = vmatpush.xpose.msra.mxu0 0.0
  %138 = vmatpush.xpose.msra.mxu0 0.0
  %139 = vmatpush.xpose.msra.mxu0 0.0
  %140 = vmatpush.xpose.msra.mxu0 0.0
  %141 = vmatpush.xpose.msra.mxu0 0.0
  %142 = vmatpush.xpose.msra.mxu0 0.0
  %143 = vmatpush.xpose.msra.mxu0 0.0
  %144 = vmatpush.xpose.msra.mxu0 0.0
  %145 = vmatpush.xpose.msra.mxu0 0.0
  %146 = vmatpush.xpose.msra.mxu0 %v130
  %147 = vmatpush.xpose.msra.mxu0 %v127
  %148 = vmatmul.f32.gmra.mxu0 %v121
  %v149 = vpop.f32.mrf.mxu0
  %v150 = vadd.f32 %v57, %v149
  %151 = vmatmul.f32.gmra.mxu0 %v124
  %v152 = vpop.f32.mrf.mxu0
  %v153 = vadd.f32 %v58, %v152
  %154 = vdwg.mxu0
  %v155 = vxor.u32 %v150, 2147483648
  %v156 = vxor.u32 %v153, 2147483648
  %v157 = vmul.f32 %v155, 1.442695
  %v158 = vpow.pop %v157
  %v159 = vmul.f32 %v156, 1.442695
  %v160 = vpow.pop %v159
  %v161 = vadd.f32 %v158, 1.0
  %v162 = vadd.f32 %v160, 1.0
  %v163 = vrcp.pop %v161
  %v164 = vmul.f32 %v161, %v163
  %v165 = vsub.f32 1.0, %v164
  %v166 = vmul.f32 %v163, %v165
  %v167 = vadd.f32 %v163, %v166
  %vm168 = vweird.f32 %v161
  %vm169 = vweird.f32 %v163
  %vm170 = vmor %vm168, %vm169
  %v171 = vsel %vm170, %v163, %v167
  %v172 = vand.u32 2147483647, %v161
  %vm173 = vcmp.eq.f32.partialorder %v172, 8.507059e+37
  %v174 = vand.u32 %v161, 2147483648
  %v175 = vor.u32 1.1754944e-38, %v174
  %v176 = vsel %vm173, %v175, %v171
  %v177 = vmul.f32 1.0, %v176
  %v178 = vrcp.pop %v162
  %v179 = vmul.f32 %v162, %v178
  %v180 = vsub.f32 1.0, %v179
  %v181 = vmul.f32 %v178, %v180
  %v182 = vadd.f32 %v178, %v181
  %vm183 = vweird.f32 %v162
  %vm184 = vweird.f32 %v178
  %vm185 = vmor %vm183, %vm184
  %v186 = vsel %vm185, %v178, %v182
  %v187 = vand.u32 2147483647, %v162
  %vm188 = vcmp.eq.f32.partialorder %v187, 8.507059e+37
  %v189 = vand.u32 %v162, 2147483648
  %v190 = vor.u32 1.1754944e-38, %v189
  %v191 = vsel %vm188, %v190, %v186
  %v192 = vmul.f32 1.0, %v191
  %v193 = vstv %s118
  %v194 = vmul.f32 %v193, %v177
  %v195 = vmul.f32 %v193, %v192
  %v196 = vadd.f32 %v194, 0.0
  %v197 = vadd.f32 %v195, 0.0
  %s198 = scalar_lea.vmem %s39, 16
  %v199 = vld [vmem:[%s198] sm:$0xff]
  %v200 = vld [vmem:[%s198 + $0x8] sm:$0xff]
  %v202 = vsel %vm63, %v199, 0
  %v205 = vsel %vm63, %v200, 0
  %207 = vmatpush.msra.mxu0 0.0
  %208 = vmatpush.msra.mxu0 0.0
  %209 = vmatpush.msra.mxu0 0.0
  %210 = vmatpush.msra.mxu0 0.0
  %211 = vmatpush.msra.mxu0 0.0
  %212 = vmatpush.msra.mxu0 0.0
  %213 = vmatpush.msra.mxu0 0.0
  %214 = vmatpush.msra.mxu0 0.0
  %215 = vmatpush.msra.mxu0 0.0
  %216 = vmatpush.msra.mxu0 0.0
  %217 = vmatpush.msra.mxu0 0.0
  %218 = vmatpush.msra.mxu0 0.0
  %219 = vmatpush.msra.mxu0 %v52
  %220 = vmatpush.msra.mxu0 %v51
  %221 = vmatpush.msra.mxu0 %v50
  %222 = vmatpush.msra.mxu0 %v49
  %223 = vmatmul.f32.gmra.mxu0 %v202
  %v224 = vpop.f32.mrf.mxu0
  %v225 = vadd.f32 0.0, %v224
  %226 = vmatmul.f32.gmra.mxu0 %v205
  %v227 = vpop.f32.mrf.mxu0
  %v228 = vadd.f32 0.0, %v227
  %229 = vdwg.mxu0
  %230 = vmatpush.msra.mxu0 0.0
  %231 = vmatpush.msra.mxu0 0.0
  %232 = vmatpush.msra.mxu0 0.0
  %233 = vmatpush.msra.mxu0 0.0
  %234 = vmatpush.msra.mxu0 0.0
  %235 = vmatpush.msra.mxu0 0.0
  %236 = vmatpush.msra.mxu0 0.0
  %237 = vmatpush.msra.mxu0 0.0
  %238 = vmatpush.msra.mxu0 0.0
  %239 = vmatpush.msra.mxu0 0.0
  %240 = vmatpush.msra.mxu0 0.0
  %241 = vmatpush.msra.mxu0 0.0
  %242 = vmatpush.msra.mxu0 %v56
  %243 = vmatpush.msra.mxu0 %v55
  %244 = vmatpush.msra.mxu0 %v54
  %245 = vmatpush.msra.mxu0 %v53
  %246 = vmatmul.f32.gmra.mxu0 %v202
  %v247 = vpop.f32.mrf.mxu0
  %v248 = vadd.f32 0.0, %v247
  %249 = vmatmul.f32.gmra.mxu0 %v205
  %v250 = vpop.f32.mrf.mxu0
  %v251 = vadd.f32 0.0, %v250
  %252 = vdwg.mxu0
  %s253 = sadd.s32 %s60, 1
  %p254 = scmp.lt.s32.totalorder %s253, 2
  %s255 = scalar_select %p254, 1, 0
  %s256 = scvt.s32.f32 %s255
  %v258 = vsel %vm119, %v225, 0
  %v261 = vsel %vm119, %v228, 0
  %v264 = vsel %vm119, %v248, 0
  %v267 = vsel %vm119, %v251, 0
  %269 = vmatpush.xpose.msra.mxu0 0.0
  %270 = vmatpush.xpose.msra.mxu0 0.0
  %271 = vmatpush.xpose.msra.mxu0 0.0
  %272 = vmatpush.xpose.msra.mxu0 0.0
  %273 = vmatpush.xpose.msra.mxu0 0.0
  %274 = vmatpush.xpose.msra.mxu0 0.0
  %275 = vmatpush.xpose.msra.mxu0 0.0
  %276 = vmatpush.xpose.msra.mxu0 0.0
  %277 = vmatpush.xpose.msra.mxu0 0.0
  %278 = vmatpush.xpose.msra.mxu0 0.0
  %279 = vmatpush.xpose.msra.mxu0 0.0
  %280 = vmatpush.xpose.msra.mxu0 0.0
  %281 = vmatpush.xpose.msra.mxu0 0.0
  %282 = vmatpush.xpose.msra.mxu0 0.0
  %283 = vmatpush.xpose.msra.mxu0 %v267
  %284 = vmatpush.xpose.msra.mxu0 %v264
  %285 = vmatmul.f32.gmra.mxu0 %v258
  %v286 = vpop.f32.mrf.mxu0
  %v287 = vadd.f32 %v57, %v286
  %288 = vmatmul.f32.gmra.mxu0 %v261
  %v289 = vpop.f32.mrf.mxu0
  %v290 = vadd.f32 %v58, %v289
  %291 = vdwg.mxu0
  %v292 = vxor.u32 %v287, 2147483648
  %v293 = vxor.u32 %v290, 2147483648
  %v294 = vmul.f32 %v292, 1.442695
  %v295 = vpow.pop %v294
  %v296 = vmul.f32 %v293, 1.442695
  %v297 = vpow.pop %v296
  %v298 = vadd.f32 %v295, 1.0
  %v299 = vadd.f32 %v297, 1.0
  %v300 = vrcp.pop %v298
  %v301 = vmul.f32 %v298, %v300
  %v302 = vsub.f32 1.0, %v301
  %v303 = vmul.f32 %v300, %v302
  %v304 = vadd.f32 %v300, %v303
  %vm305 = vweird.f32 %v298
  %vm306 = vweird.f32 %v300
  %vm307 = vmor %vm305, %vm306
  %v308 = vsel %vm307, %v300, %v304
  %v309 = vand.u32 2147483647, %v298
  %vm310 = vcmp.eq.f32.partialorder %v309, 8.507059e+37
  %v311 = vand.u32 %v298, 2147483648
  %v312 = vor.u32 1.1754944e-38, %v311
  %v313 = vsel %vm310, %v312, %v308
  %v314 = vmul.f32 1.0, %v313
  %v315 = vrcp.pop %v299
  %v316 = vmul.f32 %v299, %v315
  %v317 = vsub.f32 1.0, %v316
  %v318 = vmul.f32 %v315, %v317
  %v319 = vadd.f32 %v315, %v318
  %vm320 = vweird.f32 %v299
  %vm321 = vweird.f32 %v315
  %vm322 = vmor %vm320, %vm321
  %v323 = vsel %vm322, %v315, %v319
  %v324 = vand.u32 2147483647, %v299
  %vm325 = vcmp.eq.f32.partialorder %v324, 8.507059e+37
  %v326 = vand.u32 %v299, 2147483648
  %v327 = vor.u32 1.1754944e-38, %v326
  %v328 = vsel %vm325, %v327, %v323
  %v329 = vmul.f32 1.0, %v328
  %v330 = vstv %s256
  %v331 = vmul.f32 %v330, %v314
  %v332 = vmul.f32 %v330, %v329
  %v333 = vadd.f32 %v196, %v331
  %v334 = vadd.f32 %v197, %v332
  %v335 = vld [vmem:[%s4] sm:$0xff]
  %v336 = vld [vmem:[%s4 + $0x8] sm:$0xff]
  %v337 = vadd.f32 %v335, %v333
  %v338 = vadd.f32 %v336, %v334
  %vm339 = vcmask 130048
  %340 = vst.msk [vmem:[%s4] sm:$0xff] %vm339, %v337
  %341 = vst.msk [vmem:[%s4 + $0x8] sm:$0xff] %vm339, %v338
  // Predicated region
  $region22: #{spatial_attention.2} parent=0 // pred_check
    _
  $region23: #{spatial_attention.2} parent=0 // pred_check_branch
    %343 = sbr.rel (0) target = $region25
  $region24: #{spatial_attention.2} parent=0 // pred_region
    _
  $region25: #{spatial_attention.2} parent=0 // pred_fallthru
    _
  // Predicated region
  $region26: #{spatial_attention.2} parent=0 // pred_check
    _
  $region27: #{spatial_attention.2} parent=0 // pred_check_branch
    %345 = sbr.rel (0) target = $region29
  $region28: #{spatial_attention.2} parent=0 // pred_region
    _
  $region29: #{spatial_attention.2} parent=0 // pred_fallthru
    _

</llo_original>
